<compile_context>
chip_gen: v5e
topology: v5e:2x2
jax: 0.10.0
libtpu: 0.0.40
codegen_flags: <defaults>
</compile_context>

<pallas_src>
import jax
import jax.numpy as jnp
from jax import lax
from jax.experimental import pallas as pl
from jax.experimental.pallas import tpu as pltpu


def _round_up(x: int, m: int) -> int:
    return ((x + m - 1) // m) * m


def _padded_bytes_2d(rows: int, cols: int, itemsize: int) -> int:
    """VMEM footprint of a (rows, cols) tile: lanes pad to 128, sublanes to 8*(4/itemsize)."""
    sub = 8 * max(1, 4 // itemsize)
    return _round_up(rows, sub) * _round_up(cols, 128) * itemsize


def _qnet_mlp_kernel(s_ref, a_ref, w1s_ref, w1a_ref, b1_ref,
                     w2_ref, b2_ref, w3_ref, b3_ref, o_ref):
    """Batch-minor 2-hidden-layer MLP Q-head.

      h1 = relu(W1s^T @ S^T + W1a^T @ A^T + b1)   (h1, tb)
      h2 = relu(W2^T  @ h1 + b2)                  (h2, tb)
      q  = w3_row @ h2 + b3                       (1,  tb)   lane-dense output row
    """
    mxu_dt = w1s_ref.dtype  # f32 by default; bf16 when the wrapper casted weights+inputs.

    # Layer 1 -- split matmul replaces concat([states, actions], 1) @ w1.
    # dot_general contracts the feature (last) dims of both operands, so the
    # streamed (tb, feat) tiles need no explicit transpose.
    dn = (((1,), (1,)), ((), ()))
    h = lax.dot_general(w1s_ref[...], s_ref[...], dn,
                        preferred_element_type=jnp.float32)
    h = h + lax.dot_general(w1a_ref[...], a_ref[...], dn,
                            preferred_element_type=jnp.float32)
    h = jnp.maximum(h + b1_ref[...], 0.0)                      # (h1, tb), lane-dense VPU

    # Layer 2.
    h = jnp.dot(w2_ref[...], h.astype(mxu_dt), preferred_element_type=jnp.float32)
    h = jnp.maximum(h + b2_ref[...], 0.0)                      # (h2, tb)

    # Output layer: (1, h2) @ (h2, tb) -> lane-dense (1, tb) row (unmasked vst).
    q = jnp.dot(w3_ref[...], h.astype(mxu_dt), preferred_element_type=jnp.float32)
    o_ref[...] = (q + b3_ref[...]).astype(o_ref.dtype)


def cont_qnet_forward(states, actions, params, *, block_b=4096, mxu_dtype=None):
    """ContQNet.forward for the MLP-only architecture (cnn_first=False).

    mxu_dtype=jnp.bfloat16 halves the streamed HBM bytes (states/actions) and
    uses bf16 MXU operands with f32 accumulation; all elementwise math stays
    f32, so the path is legal on v5e, v6e and v7x.
    """
    w1, b1, w2, b2, w3, b3 = params
    B, n_states = states.shape
    n_actions = actions.shape[1]
    h1 = w1.shape[1]
    h2 = w2.shape[1]
    d_in = n_states + n_actions

    # Transpose the (tiny) weights once so the kernel runs batch-minor.
    w1s_t = w1[:n_states, :].T          # (h1, n_states)
    w1a_t = w1[n_states:, :].T          # (h1, n_actions)
    b1_t = b1.reshape(h1, 1)
    w2_t = w2.T                         # (h2, h1)
    b2_t = b2.reshape(h2, 1)
    w3_r = w3.reshape(1, h2)
    b3_r = b3.reshape(1, 1)
    if mxu_dtype is not None:
        # Cast the resident weights AND the streamed batch: the kernel is
        # HBM-bound on states/actions, so halving that stream is the real win.
        w1s_t = w1s_t.astype(mxu_dtype)
        w1a_t = w1a_t.astype(mxu_dtype)
        w2_t = w2_t.astype(mxu_dtype)
        w3_r = w3_r.astype(mxu_dtype)
        states = states.astype(mxu_dtype)
        actions = actions.astype(mxu_dtype)

    in_isz = jnp.dtype(states.dtype).itemsize
    w_isz = jnp.dtype(w1s_t.dtype).itemsize

    # --- batch tile selection -------------------------------------------------
    block_b = max(128, _round_up(block_b, 128))      # lane-dim constraint of out block
    if B > block_b:
        tb = block_b
    elif B > 256:
        # Keep >= 2 tiles so both v7x TensorCores get work via the "parallel"
        # grid axis (harmless on single-TC v5e/v6e).
        tb = _round_up(-(-B // 2), 128)
    else:
        tb = max(8, _round_up(B, 8))

    def vmem_estimate(t):
        io = 2 * (_padded_bytes_2d(t, n_states, in_isz)
                  + _padded_bytes_2d(t, n_actions, in_isz))     # double-buffered inputs
        io += 2 * _padded_bytes_2d(1, t, 4)                     # double-buffered output row
        wts = 2 * (_padded_bytes_2d(h1, n_states, w_isz)
                   + _padded_bytes_2d(h1, n_actions, w_isz)
                   + _padded_bytes_2d(h1, 1, 4)
                   + _padded_bytes_2d(h2, h1, w_isz)
                   + _padded_bytes_2d(h2, 1, 4)
                   + _padded_bytes_2d(1, h2, w_isz)
                   + _padded_bytes_2d(1, 1, 4))
        act = _padded_bytes_2d(h1, t, 4) + _padded_bytes_2d(h2, t, 4)
        if w_isz != 4:                                           # bf16 copies for the MXU
            act += _padded_bytes_2d(h1, t, w_isz) + _padded_bytes_2d(h2, t, w_isz)
        return io + wts + act

    # Shrink the tile if the (padded, double-buffered) footprint would not fit
    # comfortably on the tightest chip (v7x: 64 MiB physical VMEM).
    vmem_budget = 40 * 1024 * 1024
    while tb > 128 and int(1.5 * vmem_estimate(tb)) > vmem_budget:
        tb = max(128, _round_up(tb // 2, 128))

    n_tiles = pl.cdiv(B, tb)
    if n_tiles > 1:
        assert tb % 128 == 0, f"batch tile {tb} must be a multiple of 128"
    b_pad = n_tiles * tb
    if b_pad != B:
        pad = b_pad - B
        states = jnp.pad(states, ((0, pad), (0, 0)))
        actions = jnp.pad(actions, ((0, pad), (0, 0)))

    def resident(shape):  # same block index every step -> stays VMEM-resident
        zeros = (0,) * len(shape)
        return pl.BlockSpec(shape, lambda i: zeros)

    cost = pl.CostEstimate(
        flops=2 * b_pad * (d_in * h1 + h1 * h2 + h2),
        transcendentals=0,
        bytes_accessed=(in_isz * b_pad * d_in          # streamed states+actions
                        + 4 * b_pad                    # output row
                        + w_isz * (d_in * h1 + h1 * h2 + h2)
                        + 4 * (h1 + h2 + 1)),          # f32 biases
    )
    cparams = pltpu.CompilerParams(
        dimension_semantics=("parallel",),
        vmem_limit_bytes=int(max(16 * 1024 * 1024,
                                 min(48 * 1024 * 1024, 1.5 * vmem_estimate(tb)))),
    )

    out = pl.pallas_call(
        _qnet_mlp_kernel,
        out_shape=jax.ShapeDtypeStruct((1, b_pad), jnp.float32),
        grid=(n_tiles,),
        in_specs=[
            pl.BlockSpec((tb, n_states), lambda i: (i, 0)),
            pl.BlockSpec((tb, n_actions), lambda i: (i, 0)),
            resident((h1, n_states)),
            resident((h1, n_actions)),
            resident((h1, 1)),
            resident((h2, h1)),
            resident((h2, 1)),
            resident((1, h2)),
            resident((1, 1)),
        ],
        out_specs=pl.BlockSpec((1, tb), lambda i: (0, i)),
        compiler_params=cparams,
        cost_estimate=cost,
    )(states, actions, w1s_t, w1a_t, b1_t, w2_t, b2_t, w3_r, b3_r)

    # Lane-dense row back to the module's (B, 1) column; trims any batch padding.
    return out[0, :B].reshape(B, 1)


def init_params(key, n_states, n_actions, mlp_layers):
    """Deterministic init mimicking torch.nn.Linear default (uniform +-1/sqrt(fan_in))."""
    dims = [n_states + n_actions] + mlp_layers + [1]
    params = []
    for i in range(len(dims) - 1):
        fan_in, fan_out = dims[i], dims[i + 1]
        key, kw, kb = jax.random.split(key, 3)
        bound = 1.0 / jnp.sqrt(jnp.float32(fan_in))
        w = jax.random.uniform(kw, (fan_in, fan_out), jnp.float32, -bound, bound)
        b = jax.random.uniform(kb, (1, fan_out), jnp.float32, -bound, bound)
        params += [w, b]
    return tuple(params)


def reference_forward(states, actions, params):
    x = jnp.concatenate([states, actions], axis=1)
    w1, b1, w2, b2, w3, b3 = params
    h = jnp.maximum(x @ w1 + b1, 0.0)
    h = jnp.maximum(h @ w2 + b2, 0.0)
    return h @ w3 + b3


if __name__ == "__main__":
    # architecture = {'mlp_layers': [32, 32], 'mlp_activation': 'relu'}  (no cnn_* keys)
    n_states, n_actions = 16, 4
    mlp_layers = [32, 32]
    batch = 2

    key = jax.random.PRNGKey(0)
    k_s, k_a, k_p = jax.random.split(key, 3)
    states = jax.random.normal(k_s, (batch, n_states), jnp.float32)
    actions = jax.random.normal(k_a, (batch, n_actions), jnp.float32)
    params = init_params(k_p, n_states, n_actions, mlp_layers)

    # Small-batch path (single tile; lane dim equals full padded batch).
    q = jax.block_until_ready(cont_qnet_forward(states, actions, params))
    q_ref = reference_forward(states, actions, params)
    assert q.shape == (batch, 1)
    assert jnp.allclose(q, q_ref, atol=1e-5, rtol=1e-5), (q, q_ref)

    # Multi-tile grid + padding/trim path (f32): B=1000 -> two 512-row tiles.
    big = 1000
    k_s2, k_a2 = jax.random.split(jax.random.PRNGKey(1), 2)
    states2 = jax.random.normal(k_s2, (big, n_states), jnp.float32)
    actions2 = jax.random.normal(k_a2, (big, n_actions), jnp.float32)
    q2 = jax.block_until_ready(cont_qnet_forward(states2, actions2, params))
    q2_ref = reference_forward(states2, actions2, params)
    assert q2.shape == (big, 1)
    assert jnp.allclose(q2, q2_ref, atol=1e-4, rtol=1e-4)

    # bf16 streamed-input path (halved HBM traffic; bf16 MXU, f32 accumulate/elementwise).
    q3 = jax.block_until_ready(
        cont_qnet_forward(states2, actions2, params, mxu_dtype=jnp.bfloat16))
    assert q3.shape == (big, 1)
    assert jnp.allclose(q3, q2_ref, atol=5e-2, rtol=5e-2)

    # TODO(synk): optional CNN front-end (cnn_first=True) not implemented; the CNN
    # class is not defined in the provided module, so only the MLP Q-head path is kernelized.
    print("KERNEL_OK")
</pallas_src>

<mosaic_0001>
module attributes {stable_mosaic.version = 11 : i64} {
  func.func @_qnet_mlp_kernel(%arg0: i32, %arg1: memref<8x16xf32, #tpu.memory_space<vmem>>, %arg2: memref<8x4xf32, #tpu.memory_space<vmem>>, %arg3: memref<32x16xf32, #tpu.memory_space<vmem>>, %arg4: memref<32x4xf32, #tpu.memory_space<vmem>>, %arg5: memref<32x1xf32, #tpu.memory_space<vmem>>, %arg6: memref<32x32xf32, #tpu.memory_space<vmem>>, %arg7: memref<32x1xf32, #tpu.memory_space<vmem>>, %arg8: memref<1x32xf32, #tpu.memory_space<vmem>>, %arg9: memref<1x1xf32, #tpu.memory_space<vmem>>, %arg10: memref<1x8xf32, #tpu.memory_space<vmem>>) attributes {dimension_semantics = [#tpu.dimension_semantics<parallel>], iteration_bounds = array<i64: 1>, scalar_prefetch = 0 : i64, scratch_operands = 0 : i64, tpu.core_type = #tpu.core_type<tc>, window_params = [{transform_indices = @transform_0, window_bounds = array<i64: 8, 16>}, {transform_indices = @transform_1, window_bounds = array<i64: 8, 4>}, {pipeline_mode = #tpu.pipeline_mode<synchronous>, transform_indices = @transform_2, window_bounds = array<i64: 32, 16>}, {pipeline_mode = #tpu.pipeline_mode<synchronous>, transform_indices = @transform_3, window_bounds = array<i64: 32, 4>}, {pipeline_mode = #tpu.pipeline_mode<synchronous>, transform_indices = @transform_4, window_bounds = array<i64: 32, 1>}, {pipeline_mode = #tpu.pipeline_mode<synchronous>, transform_indices = @transform_5, window_bounds = array<i64: 32, 32>}, {pipeline_mode = #tpu.pipeline_mode<synchronous>, transform_indices = @transform_6, window_bounds = array<i64: 32, 1>}, {pipeline_mode = #tpu.pipeline_mode<synchronous>, transform_indices = @transform_7, window_bounds = array<i64: 1, 32>}, {pipeline_mode = #tpu.pipeline_mode<synchronous>, transform_indices = @transform_8, window_bounds = array<i64: 1, 1>}, {transform_indices = @transform_9, window_bounds = array<i64: 1, 8>}]} {
    %c0 = arith.constant 0 : index
    %c0_0 = arith.constant 0 : index
    %0 = vector.load %arg3[%c0, %c0_0] : memref<32x16xf32, #tpu.memory_space<vmem>>, vector<32x16xf32>
    %c0_1 = arith.constant 0 : index
    %c0_2 = arith.constant 0 : index
    %1 = vector.load %arg1[%c0_1, %c0_2] : memref<8x16xf32, #tpu.memory_space<vmem>>, vector<8x16xf32>
    %cst = arith.constant dense<0.000000e+00> : vector<32x8xf32>
    %2 = tpu.matmul %0, %1, %cst {dimension_numbers = #tpu.dot_dimension_numbers<[1], [1], [0], [0], [0, 0, 1, 0], [], []>} : vector<32x16xf32>, vector<8x16xf32>, vector<32x8xf32> -> vector<32x8xf32>
    %c0_3 = arith.constant 0 : index
    %c0_4 = arith.constant 0 : index
    %3 = vector.load %arg4[%c0_3, %c0_4] : memref<32x4xf32, #tpu.memory_space<vmem>>, vector<32x4xf32>
    %c0_5 = arith.constant 0 : index
    %c0_6 = arith.constant 0 : index
    %4 = vector.load %arg2[%c0_5, %c0_6] : memref<8x4xf32, #tpu.memory_space<vmem>>, vector<8x4xf32>
    %cst_7 = arith.constant dense<0.000000e+00> : vector<32x8xf32>
    %5 = tpu.matmul %3, %4, %cst_7 {dimension_numbers = #tpu.dot_dimension_numbers<[1], [1], [0], [0], [0, 0, 1, 0], [], []>} : vector<32x4xf32>, vector<8x4xf32>, vector<32x8xf32> -> vector<32x8xf32>
    %6 = arith.addf %2, %5 : vector<32x8xf32>
    %c0_8 = arith.constant 0 : index
    %c0_9 = arith.constant 0 : index
    %7 = vector.load %arg5[%c0_8, %c0_9] : memref<32x1xf32, #tpu.memory_space<vmem>>, vector<32x1xf32>
    %8 = vector.broadcast %7 : vector<32x1xf32> to vector<32x8xf32>
    %9 = arith.addf %6, %8 : vector<32x8xf32>
    %cst_10 = arith.constant 0.000000e+00 : f32
    %10 = vector.broadcast %cst_10 : f32 to vector<32x8xf32>
    %11 = arith.maximumf %9, %10 : vector<32x8xf32>
    %c0_11 = arith.constant 0 : index
    %c0_12 = arith.constant 0 : index
    %12 = vector.load %arg6[%c0_11, %c0_12] : memref<32x32xf32, #tpu.memory_space<vmem>>, vector<32x32xf32>
    %cst_13 = arith.constant dense<0.000000e+00> : vector<32x8xf32>
    %13 = tpu.matmul %12, %11, %cst_13 {dimension_numbers = #tpu.dot_dimension_numbers<[1], [0], [0], [1], [0, 0, 1, 1], [], []>} : vector<32x32xf32>, vector<32x8xf32>, vector<32x8xf32> -> vector<32x8xf32>
    %c0_14 = arith.constant 0 : index
    %c0_15 = arith.constant 0 : index
    %14 = vector.load %arg7[%c0_14, %c0_15] : memref<32x1xf32, #tpu.memory_space<vmem>>, vector<32x1xf32>
    %15 = vector.broadcast %14 : vector<32x1xf32> to vector<32x8xf32>
    %16 = arith.addf %13, %15 : vector<32x8xf32>
    %cst_16 = arith.constant 0.000000e+00 : f32
    %17 = vector.broadcast %cst_16 : f32 to vector<32x8xf32>
    %18 = arith.maximumf %16, %17 : vector<32x8xf32>
    %c0_17 = arith.constant 0 : index
    %c0_18 = arith.constant 0 : index
    %19 = vector.load %arg8[%c0_17, %c0_18] : memref<1x32xf32, #tpu.memory_space<vmem>>, vector<1x32xf32>
    %cst_19 = arith.constant dense<0.000000e+00> : vector<1x8xf32>
    %20 = tpu.matmul %19, %18, %cst_19 {dimension_numbers = #tpu.dot_dimension_numbers<[1], [0], [0], [1], [0, 0, 1, 1], [], []>} : vector<1x32xf32>, vector<32x8xf32>, vector<1x8xf32> -> vector<1x8xf32>
    %c0_20 = arith.constant 0 : index
    %c0_21 = arith.constant 0 : index
    %21 = vector.load %arg9[%c0_20, %c0_21] : memref<1x1xf32, #tpu.memory_space<vmem>>, vector<1x1xf32>
    %22 = vector.broadcast %21 : vector<1x1xf32> to vector<1x8xf32>
    %23 = arith.addf %20, %22 : vector<1x8xf32>
    %c0_22 = arith.constant 0 : index
    %c0_23 = arith.constant 0 : index
    %24 = vector.load %arg10[%c0_22, %c0_23] : memref<1x8xf32, #tpu.memory_space<vmem>>, vector<1x8xf32>
    tpu.vector_store %arg10[%c0_22, %c0_23], %23 {strides = array<i32>} : memref<1x8xf32, #tpu.memory_space<vmem>>, vector<1x8xf32>,
    return
  }
  func.func @transform_0(%arg0: i32) -> (i32, i32) {
    %c0_i32 = arith.constant 0 : i32
    %c0_i32_0 = arith.constant 0 : i32
    return %arg0, %c0_i32 : i32, i32
  }
  func.func @transform_1(%arg0: i32) -> (i32, i32) {
    %c0_i32 = arith.constant 0 : i32
    %c0_i32_0 = arith.constant 0 : i32
    return %arg0, %c0_i32 : i32, i32
  }
  func.func @transform_2(%arg0: i32) -> (i32, i32) {
    %c0_i32 = arith.constant 0 : i32
    %c0_i32_0 = arith.constant 0 : i32
    %c0_i32_1 = arith.constant 0 : i32
    return %c0_i32, %c0_i32_0 : i32, i32
  }
  func.func @transform_3(%arg0: i32) -> (i32, i32) {
    %c0_i32 = arith.constant 0 : i32
    %c0_i32_0 = arith.constant 0 : i32
    %c0_i32_1 = arith.constant 0 : i32
    return %c0_i32, %c0_i32_0 : i32, i32
  }
  func.func @transform_4(%arg0: i32) -> (i32, i32) {
    %c0_i32 = arith.constant 0 : i32
    %c0_i32_0 = arith.constant 0 : i32
    %c0_i32_1 = arith.constant 0 : i32
    return %c0_i32, %c0_i32_0 : i32, i32
  }
  func.func @transform_5(%arg0: i32) -> (i32, i32) {
    %c0_i32 = arith.constant 0 : i32
    %c0_i32_0 = arith.constant 0 : i32
    %c0_i32_1 = arith.constant 0 : i32
    return %c0_i32, %c0_i32_0 : i32, i32
  }
  func.func @transform_6(%arg0: i32) -> (i32, i32) {
    %c0_i32 = arith.constant 0 : i32
    %c0_i32_0 = arith.constant 0 : i32
    %c0_i32_1 = arith.constant 0 : i32
    return %c0_i32, %c0_i32_0 : i32, i32
  }
  func.func @transform_7(%arg0: i32) -> (i32, i32) {
    %c0_i32 = arith.constant 0 : i32
    %c0_i32_0 = arith.constant 0 : i32
    %c0_i32_1 = arith.constant 0 : i32
    return %c0_i32, %c0_i32_0 : i32, i32
  }
  func.func @transform_8(%arg0: i32) -> (i32, i32) {
    %c0_i32 = arith.constant 0 : i32
    %c0_i32_0 = arith.constant 0 : i32
    %c0_i32_1 = arith.constant 0 : i32
    return %c0_i32, %c0_i32_0 : i32, i32
  }
  func.func @transform_9(%arg0: i32) -> (i32, i32) {
    %c0_i32 = arith.constant 0 : i32
    %c0_i32_0 = arith.constant 0 : i32
    return %c0_i32, %arg0 : i32, i32
  }
}

</mosaic_0001>

<llo_original>
// kernel: tpu_custom_call.1
$region0: #{tpu_custom_call.1}
  #allocation0 [shape = 'u32[]', space=smem, size = 0x4, offset = 0x4, fixed_abs, tag = 'smem constant byte address 0x4 - core index']
  #allocation1 [shape = 'u32[72,128]{1,0:T(1,128)}', space=vmem, size = 0x9000, scoped, tag = 'internal scratch']
  #allocation2 [shape = 'f32[1,1]{1,0:T(1,128)S(1)}', space=vmem, size = 0x200, scoped, tag = 'scoped memory for tpu_custom_call.1']
  %s0 = inlined_call_operand.vmem [shape: f32[8,16], index: 0, kind: input, shape index: {}]
  %s1 = inlined_call_operand.vmem [shape: f32[8,4], index: 1, kind: input, shape index: {}]
  %s2 = inlined_call_operand.vmem [shape: f32[32,16], index: 2, kind: input, shape index: {}]
  %s3 = inlined_call_operand.vmem [shape: f32[32,4], index: 3, kind: input, shape index: {}]
  %s4 = inlined_call_operand.vmem [shape: f32[32,1], index: 4, kind: input, shape index: {}]
  %s5 = inlined_call_operand.vmem [shape: f32[32,32], index: 5, kind: input, shape index: {}]
  %s6 = inlined_call_operand.vmem [shape: f32[32,1], index: 6, kind: input, shape index: {}]
  %s7 = inlined_call_operand.vmem [shape: f32[1,32], index: 7, kind: input, shape index: {}]
  %s8 = inlined_call_operand.<no memory space> [shape: f32[1,1], index: 8, kind: input, shape index: {}]
  %s9 = inlined_call_operand.hbm [shape: f32[1,8], index: 9, kind: output, shape index: {}]
  %s10 = sld [smem:[#allocation0]]
  $region46: #{tpu_custom_call.1} parent=0
    _
  %s12 = ssub.s32 1, %s10
  %s13 = scalar_select 0, %s12, %s10
  %v14 = vstv %s8
  %15 = vst [vmem:[#allocation2] sm:$0x1] %v14
  $region1: #{tpu_custom_call.1} parent=0
    #allocation3 [shape = 'u8[512]{0}', space=vmem, size = 0x400, scoped, tag = 'output window, operand 0, single buffered']
    #allocation4 [shape = 's32[1]{0}', space=sflag, size = 0x4, scoped, tag = 'scoped memory for tpu_custom_call.1']
    %16 = vsyncpa [#allocation4], 0
    // Predicated region
    $region2: #{tpu_custom_call.1} parent=1 // pred_check
      _
    $region3: #{tpu_custom_call.1} parent=1 // pred_check_branch
      %18 = sbr.rel (0) target = $region5
    $region4: #{tpu_custom_call.1} parent=1 // pred_region
      _
    $region5: #{tpu_custom_call.1} parent=1 // pred_fallthru
      _
    // Predicated region
    $region6: #{tpu_custom_call.1} parent=1 // pred_check
      _
    $region7: #{tpu_custom_call.1} parent=1 // pred_check_branch
      %20 = sbr.rel (0) target = $region9
    $region8: #{tpu_custom_call.1} parent=1 // pred_region
      _
    $region9: #{tpu_custom_call.1} parent=1 // pred_fallthru
      _
    // Predicated region
    $region10: #{tpu_custom_call.1} parent=1 // pred_check
      _
    $region11: #{tpu_custom_call.1} parent=1 // pred_check_branch
      %22 = sbr.rel (0) target = $region13
    $region12: #{tpu_custom_call.1} parent=1 // pred_region
      _
    $region13: #{tpu_custom_call.1} parent=1 // pred_fallthru
      _
    // Predicated region
    $region14: #{tpu_custom_call.1} parent=1 // pred_check
      _
    $region15: #{tpu_custom_call.1} parent=1 // pred_check_branch
      %24 = sbr.rel (0) target = $region17
    $region16: #{tpu_custom_call.1} parent=1 // pred_region
      _
    $region17: #{tpu_custom_call.1} parent=1 // pred_fallthru
      _
    // Predicated region
    $region18: #{tpu_custom_call.1} parent=1 // pred_check
      _
    $region19: #{tpu_custom_call.1} parent=1 // pred_check_branch
      %26 = sbr.rel (0) target = $region21
    $region20: #{tpu_custom_call.1} parent=1 // pred_region
      _
    $region21: #{tpu_custom_call.1} parent=1 // pred_fallthru
      _
    // Predicated region
    $region22: #{tpu_custom_call.1} parent=1 // pred_check
      _
    $region23: #{tpu_custom_call.1} parent=1 // pred_check_branch
      %28 = sbr.rel (0) target = $region25
    $region24: #{tpu_custom_call.1} parent=1 // pred_region
      _
    $region25: #{tpu_custom_call.1} parent=1 // pred_fallthru
      _
    // Predicated region
    $region26: #{tpu_custom_call.1} parent=1 // pred_check
      _
    $region27: #{tpu_custom_call.1} parent=1 // pred_check_branch
      %30 = sbr.rel (0) target = $region29
    $region28: #{tpu_custom_call.1} parent=1 // pred_region
      _
    $region29: #{tpu_custom_call.1} parent=1 // pred_fallthru
      _
    // Predicated region
    $region30: #{tpu_custom_call.1} parent=1 // pred_check
      _
    $region31: #{tpu_custom_call.1} parent=1 // pred_check_branch
      %32 = sbr.rel (0) target = $region33
    $region32: #{tpu_custom_call.1} parent=1 // pred_region
      _
    $region33: #{tpu_custom_call.1} parent=1 // pred_fallthru
      _
    // Predicated region
    $region34: #{tpu_custom_call.1} parent=1 // pred_check
      _
    $region35: #{tpu_custom_call.1} parent=1 // pred_check_branch
      %34 = sbr.rel (0) target = $region37
    $region36: #{tpu_custom_call.1} parent=1 // pred_region
      _
    $region37: #{tpu_custom_call.1} parent=1 // pred_fallthru
      _
    %v35 = vld [vmem:[%s2] sm:$0xff]
    %v36 = vld [vmem:[%s2 + $0x8] sm:$0xff]
    %v37 = vld [vmem:[%s2 + $0x10] sm:$0xff]
    %v38 = vld [vmem:[%s2 + $0x18] sm:$0xff]
    %v39 = vld [vmem:[%s0] sm:$0xff]
    %v40 = vld [vmem:[%s3] sm:$0xff]
    %v41 = vld [vmem:[%s3 + $0x8] sm:$0xff]
    %v42 = vld [vmem:[%s3 + $0x10] sm:$0xff]
    %v43 = vld [vmem:[%s3 + $0x18] sm:$0xff]
    %v44 = vld [vmem:[%s1] sm:$0xff]
    %vm45 = vcmask 31744
    %v47 = vsel %vm45, %v40, 0
    %v50 = vsel %vm45, %v41, 0
    %v53 = vsel %vm45, %v42, 0
    %v56 = vsel %vm45, %v43, 0
    %v59 = vsel %vm45, %v44, 0
    %61 = vmatpush.xpose.msra.mxu0 0.0
    %62 = vmatpush.xpose.msra.mxu0 0.0
    %63 = vmatpush.xpose.msra.mxu0 0.0
    %64 = vmatpush.xpose.msra.mxu0 0.0
    %65 = vmatpush.xpose.msra.mxu0 0.0
    %66 = vmatpush.xpose.msra.mxu0 0.0
    %67 = vmatpush.xpose.msra.mxu0 0.0
    %68 = vmatpush.xpose.msra.mxu0 0.0
    %69 = vmatpush.xpose.msra.mxu0 0.0
    %70 = vmatpush.xpose.msra.mxu0 0.0
    %71 = vmatpush.xpose.msra.mxu0 0.0
    %72 = vmatpush.xpose.msra.mxu0 0.0
    %73 = vmatpush.xpose.msra.mxu0 0.0
    %74 = vmatpush.xpose.msra.mxu0 0.0
    %75 = vmatpush.xpose.msra.mxu0 0.0
    %76 = vmatpush.xpose.msra.mxu0 %v59
    %77 = vmatmul.f32.gmra.mxu0 %v47
    %v78 = vpop.f32.mrf.mxu0
    %v79 = vadd.f32 0.0, %v78
    %80 = vmatmul.f32.gmra.mxu0 %v50
    %v81 = vpop.f32.mrf.mxu0
    %v82 = vadd.f32 0.0, %v81
    %83 = vmatmul.f32.gmra.mxu0 %v53
    %v84 = vpop.f32.mrf.mxu0
    %v85 = vadd.f32 0.0, %v84
    %86 = vmatmul.f32.gmra.mxu0 %v56
    %v87 = vpop.f32.mrf.mxu0
    %v88 = vadd.f32 0.0, %v87
    %89 = vdwg.mxu0
    %vm90 = vcmask 130048
    %v92 = vsel %vm90, %v35, 0
    %v95 = vsel %vm90, %v36, 0
    %v98 = vsel %vm90, %v37, 0
    %v101 = vsel %vm90, %v38, 0
    %v104 = vsel %vm90, %v39, 0
    %106 = vmatpush.xpose.msra.mxu0 0.0
    %107 = vmatpush.xpose.msra.mxu0 0.0
    %108 = vmatpush.xpose.msra.mxu0 0.0
    %109 = vmatpush.xpose.msra.mxu0 0.0
    %110 = vmatpush.xpose.msra.mxu0 0.0
    %111 = vmatpush.xpose.msra.mxu0 0.0
    %112 = vmatpush.xpose.msra.mxu0 0.0
    %113 = vmatpush.xpose.msra.mxu0 0.0
    %114 = vmatpush.xpose.msra.mxu0 0.0
    %115 = vmatpush.xpose.msra.mxu0 0.0
    %116 = vmatpush.xpose.msra.mxu0 0.0
    %117 = vmatpush.xpose.msra.mxu0 0.0
    %118 = vmatpush.xpose.msra.mxu0 0.0
    %119 = vmatpush.xpose.msra.mxu0 0.0
    %120 = vmatpush.xpose.msra.mxu0 0.0
    %121 = vmatpush.xpose.msra.mxu0 %v104
    %122 = vmatmul.f32.gmra.mxu0 %v92
    %v123 = vpop.f32.mrf.mxu0
    %v124 = vadd.f32 %v79, %v123
    %125 = vmatmul.f32.gmra.mxu0 %v95
    %v126 = vpop.f32.mrf.mxu0
    %v127 = vadd.f32 %v82, %v126
    %128 = vmatmul.f32.gmra.mxu0 %v98
    %v129 = vpop.f32.mrf.mxu0
    %v130 = vadd.f32 %v85, %v129
    %131 = vmatmul.f32.gmra.mxu0 %v101
    %v132 = vpop.f32.mrf.mxu0
    %v133 = vadd.f32 %v88, %v132
    %134 = vdwg.mxu0
    %v135 = vld [vmem:[%s4] sm:$0xff]
    %v136 = vld [vmem:[%s4 + $0x8] sm:$0xff]
    %v137 = vld [vmem:[%s4 + $0x10] sm:$0xff]
    %v138 = vld [vmem:[%s4 + $0x18] sm:$0xff]
    %140 = vset.pattern.permute.xlu0 0
    %141 = vperm.xlu0 %140, %v135
    %v142 = vpop.permute.xlu0 %141
    %145 = vset.pattern.permute.xlu0 0
    %146 = vperm.xlu0 %145, %v136
    %v147 = vpop.permute.xlu0 %146
    %150 = vset.pattern.permute.xlu0 0
    %151 = vperm.xlu0 %150, %v137
    %v152 = vpop.permute.xlu0 %151
    %155 = vset.pattern.permute.xlu0 0
    %156 = vperm.xlu0 %155, %v138
    %v157 = vpop.permute.xlu0 %156
    %v159 = vadd.f32 %v124, %v142
    %v160 = vadd.f32 %v127, %v147
    %v161 = vadd.f32 %v130, %v152
    %v162 = vadd.f32 %v133, %v157
    %v163 = vmax.f32 %v159, 0.0
    %v164 = vmax.f32 %v160, 0.0
    %v165 = vmax.f32 %v161, 0.0
    %v166 = vmax.f32 %v162, 0.0
    %v167 = vld [vmem:[%s5] sm:$0xff]
    %v168 = vld [vmem:[%s5 + $0x8] sm:$0xff]
    %v169 = vld [vmem:[%s5 + $0x10] sm:$0xff]
    %v170 = vld [vmem:[%s5 + $0x18] sm:$0xff]
    %v171 = vld [vmem:[%s6] sm:$0xff]
    %v172 = vld [vmem:[%s6 + $0x8] sm:$0xff]
    %v173 = vld [vmem:[%s6 + $0x10] sm:$0xff]
    %v174 = vld [vmem:[%s6 + $0x18] sm:$0xff]
    %176 = vset.pattern.permute.xlu0 0
    %177 = vperm.xlu0 %176, %v171
    %v178 = vpop.permute.xlu0 %177
    %181 = vset.pattern.permute.xlu0 0
    %182 = vperm.xlu0 %181, %v172
    %v183 = vpop.permute.xlu0 %182
    %186 = vset.pattern.permute.xlu0 0
    %187 = vperm.xlu0 %186, %v173
    %v188 = vpop.permute.xlu0 %187
    %191 = vset.pattern.permute.xlu0 0
    %192 = vperm.xlu0 %191, %v174
    %v193 = vpop.permute.xlu0 %192
    %vm195 = vcmask 261120
    %v197 = vsel %vm195, %v167, 0
    %v200 = vsel %vm195, %v168, 0
    %v203 = vsel %vm195, %v169, 0
    %v206 = vsel %vm195, %v170, 0
    %208 = vmatpush.msra.mxu0 0.0
    %209 = vmatpush.msra.mxu0 0.0
    %210 = vmatpush.msra.mxu0 0.0
    %211 = vmatpush.msra.mxu0 0.0
    %212 = vmatpush.msra.mxu0 0.0
    %213 = vmatpush.msra.mxu0 0.0
    %214 = vmatpush.msra.mxu0 0.0
    %215 = vmatpush.msra.mxu0 0.0
    %216 = vmatpush.msra.mxu0 0.0
    %217 = vmatpush.msra.mxu0 0.0
    %218 = vmatpush.msra.mxu0 0.0
    %219 = vmatpush.msra.mxu0 0.0
    %220 = vmatpush.msra.mxu0 %v166
    %221 = vmatpush.msra.mxu0 %v165
    %222 = vmatpush.msra.mxu0 %v164
    %223 = vmatpush.msra.mxu0 %v163
    %224 = vmatmul.f32.gmra.mxu0 %v197
    %v225 = vpop.f32.mrf.mxu0
    %v226 = vadd.f32 %v178, %v225
    %227 = vmatmul.f32.gmra.mxu0 %v200
    %v228 = vpop.f32.mrf.mxu0
    %v229 = vadd.f32 %v183, %v228
    %230 = vmatmul.f32.gmra.mxu0 %v203
    %v231 = vpop.f32.mrf.mxu0
    %v232 = vadd.f32 %v188, %v231
    %233 = vmatmul.f32.gmra.mxu0 %v206
    %v234 = vpop.f32.mrf.mxu0
    %v235 = vadd.f32 %v193, %v234
    %236 = vdwg.mxu0
    %v237 = vmax.f32 %v226, 0.0
    %v238 = vmax.f32 %v229, 0.0
    %v239 = vmax.f32 %v232, 0.0
    %v240 = vmax.f32 %v235, 0.0
    %v241 = vld [vmem:[%s7] sm:$0x1]
    %v242 = vld [vmem:[#allocation2] sm:$0x1]
    %244 = vset.pattern.permute.xlu0 0
    %245 = vperm.xlu0 %244, %v242
    %v246 = vpop.permute.xlu0 %245
    %v248 = vperm.slane %v246, 0
    %v250 = vsel %vm195, %v241, 0
    %252 = vmatpush.msra.mxu0 0.0
    %253 = vmatpush.msra.mxu0 0.0
    %254 = vmatpush.msra.mxu0 0.0
    %255 = vmatpush.msra.mxu0 0.0
    %256 = vmatpush.msra.mxu0 0.0
    %257 = vmatpush.msra.mxu0 0.0
    %258 = vmatpush.msra.mxu0 0.0
    %259 = vmatpush.msra.mxu0 0.0
    %260 = vmatpush.msra.mxu0 0.0
    %261 = vmatpush.msra.mxu0 0.0
    %262 = vmatpush.msra.mxu0 0.0
    %263 = vmatpush.msra.mxu0 0.0
    %264 = vmatpush.msra.mxu0 %v240
    %265 = vmatpush.msra.mxu0 %v239
    %266 = vmatpush.msra.mxu0 %v238
    %267 = vmatpush.msra.mxu0 %v237
    %268 = vmatmul.f32.gmra.mxu0 %v250
    %v269 = vpop.f32.mrf.mxu0
    %v270 = vadd.f32 %v248, %v269
    %271 = vdwg.mxu0
    %vm272 = vcmask 57344
    %273 = vst.msk [vmem:[#allocation3] sm:$0x1] %vm272, %v270
    // Predicated region
    $region38: #{tpu_custom_call.1} parent=1 // pred_check
      _
    $region39: #{tpu_custom_call.1} parent=1 // pred_check_branch
      %275 = sbr.rel (0) target = $region41
    $region40: #{tpu_custom_call.1} parent=1 // pred_region
      %277 = vsyncadd [#allocation4], 0
      %s279 = sshll.u32 [#allocation3], 4
      %s280 = int_to_ptr.vmem [resolvable:$true] %s279
      %s281 = sshll.u32 %s9, 4
      %s282 = int_to_ptr.hbm [resolvable:$true] %s281
      %284 = dma.vmem_to_hbm [thread:$0]  %s280, 16, %s282, [#allocation4]
    $region41: #{tpu_custom_call.1} parent=1 // pred_fallthru
      _
    // Predicated region
    $region42: #{tpu_custom_call.1} parent=1 // pred_check
      _
    $region43: #{tpu_custom_call.1} parent=1 // pred_check_branch
      %286 = sbr.rel (0) target = $region45
    $region44: #{tpu_custom_call.1} parent=1 // pred_region
      %288 = dma.done [#allocation4], 16
    $region45: #{tpu_custom_call.1} parent=1 // pred_fallthru
      _
    %289 = vsyncpa [#allocation4], 1

</llo_original>
